<compile_context>
chip_gen: v6e
topology: v6e:2x2x1
jax: 0.10.0
libtpu: 0.0.40
codegen_flags: <defaults>
</compile_context>

<pallas_src>
import functools
import math

import jax
import jax.numpy as jnp
from jax.experimental import pallas as pl
from jax.experimental.pallas import tpu as pltpu

VMEM_LIMIT = 32 * 1024 * 1024  # safe on v5e/v6e (128 MiB) and v7x (64 MiB physical)


# ----------------------------------------------------------------------------
# small in-kernel helpers (pure functions of values, traced inside kernels)
# ----------------------------------------------------------------------------
def _ln_f32(x, g, b, eps=1e-12):
    mu = jnp.mean(x, axis=-1, keepdims=True)
    var = jnp.mean((x - mu) ** 2, axis=-1, keepdims=True)
    return (x - mu) * jax.lax.rsqrt(var + eps) * g + b


def _gelu(y):
    # TODO(synk): HF DistilBERT uses exact erf-GELU; tanh approximation used here.
    return 0.5 * y * (1.0 + jnp.tanh(0.7978845608028654 * (y + 0.044715 * y * y * y)))


# ----------------------------------------------------------------------------
# Kernel 1: fused QKV projection  (x [M,H] @ Wqkv [H,3H] + b -> [M,3H]), single step
# ----------------------------------------------------------------------------
def _qkv_proj_kernel(x_ref, w_ref, b_ref, o_ref):
    x = x_ref[...].astype(jnp.bfloat16)
    y = jnp.dot(x, w_ref[...], preferred_element_type=jnp.float32) + b_ref[...]
    o_ref[...] = y.astype(o_ref.dtype)


def qkv_proj(x, wqkv, bqkv):
    M, H = x.shape
    N = wqkv.shape[1]
    return pl.pallas_call(
        _qkv_proj_kernel,
        out_shape=jax.ShapeDtypeStruct((M, N), jnp.float32),
        compiler_params=pltpu.CompilerParams(vmem_limit_bytes=VMEM_LIMIT),
    )(x, wqkv, bqkv.reshape(1, N))


# ----------------------------------------------------------------------------
# Kernel 2: per-batch self-attention, all heads in one grid step, output [B,S,H]
# ----------------------------------------------------------------------------
def _attn_kernel(qkv_ref, m_ref, o_ref, *, n_heads, d_head, scale):
    H = n_heads * d_head
    mask = m_ref[0]                                  # [1, S] additive (-1e9 on padded keys)
    for h in range(n_heads):                         # static unroll over heads
        lo = h * d_head
        q = qkv_ref[0, :, lo:lo + d_head].astype(jnp.float32)                  # [S, dH]
        k = qkv_ref[0, :, H + lo:H + lo + d_head].astype(jnp.float32)          # [S, dH]
        v = qkv_ref[0, :, 2 * H + lo:2 * H + lo + d_head].astype(jnp.float32)  # [S, dH]
        s = jnp.dot(q, k.T, preferred_element_type=jnp.float32) * scale + mask
        s = s - jnp.max(s, axis=-1, keepdims=True)
        p = jnp.exp(s)
        p = p * pl.reciprocal(jnp.sum(p, axis=-1, keepdims=True), approx=True)
        ctx = jnp.dot(p, v, preferred_element_type=jnp.float32)                # [S, dH]
        o_ref[:, :, lo:lo + d_head] = ctx[None, :, :].astype(o_ref.dtype)


def attention(qkv, mask_add, n_heads):
    B, S, H3 = qkv.shape
    H = H3 // 3
    d_head = H // n_heads
    kern = functools.partial(_attn_kernel, n_heads=n_heads, d_head=d_head,
                             scale=1.0 / math.sqrt(d_head))
    return pl.pallas_call(
        kern,
        out_shape=jax.ShapeDtypeStruct((B, S, H), jnp.float32),
        grid_spec=pltpu.PrefetchScalarGridSpec(
            num_scalar_prefetch=0,
            grid=(B,),
            in_specs=[
                pl.BlockSpec((1, S, H3), lambda b: (b, 0, 0)),
                pl.BlockSpec((1, 1, S), lambda b: (b, 0, 0)),
            ],
            out_specs=pl.BlockSpec((1, S, H), lambda b: (b, 0, 0)),
        ),
        compiler_params=pltpu.CompilerParams(
            dimension_semantics=("parallel",),       # B>=2 -> shards across v7x's 2 TCs
            vmem_limit_bytes=VMEM_LIMIT),
    )(qkv, mask_add)


# ----------------------------------------------------------------------------
# Kernel 3: fused layer tail
#   ctx @ Wo + bo + residual -> LN1 -> gelu(. @ W1 + b1) @ W2 + b2 + . -> LN2
# ----------------------------------------------------------------------------
def _layer_tail_kernel(ctx_ref, res_ref, wo_ref, bo_ref, g1_ref, be1_ref,
                       w1_ref, b1_ref, w2_ref, b2_ref, g2_ref, be2_ref, o_ref):
    ctx = ctx_ref[...].astype(jnp.bfloat16)
    res = res_ref[...].astype(jnp.float32)
    y = jnp.dot(ctx, wo_ref[...], preferred_element_type=jnp.float32) + bo_ref[...] + res
    y = _ln_f32(y, g1_ref[...], be1_ref[...])
    h = jnp.dot(y.astype(jnp.bfloat16), w1_ref[...],
                preferred_element_type=jnp.float32) + b1_ref[...]
    h = _gelu(h)
    z = jnp.dot(h.astype(jnp.bfloat16), w2_ref[...],
                preferred_element_type=jnp.float32) + b2_ref[...] + y
    z = _ln_f32(z, g2_ref[...], be2_ref[...])
    o_ref[...] = z.astype(o_ref.dtype)


def layer_tail(ctx, res, p):
    M, H = ctx.shape
    F = p["w1"].shape[1]
    return pl.pallas_call(
        _layer_tail_kernel,
        out_shape=jax.ShapeDtypeStruct((M, H), jnp.float32),
        compiler_params=pltpu.CompilerParams(vmem_limit_bytes=VMEM_LIMIT),
    )(ctx, res,
      p["wo"], p["bo"].reshape(1, H), p["ln1_g"].reshape(1, H), p["ln1_b"].reshape(1, H),
      p["w1"], p["b1"].reshape(1, F), p["w2"], p["b2"].reshape(1, H),
      p["ln2_g"].reshape(1, H), p["ln2_b"].reshape(1, H))


# ----------------------------------------------------------------------------
# Kernel 4: embedding LayerNorm
# ----------------------------------------------------------------------------
def _layernorm_kernel(x_ref, g_ref, b_ref, o_ref):
    x = x_ref[...].astype(jnp.float32)
    o_ref[...] = _ln_f32(x, g_ref[...], b_ref[...]).astype(o_ref.dtype)


def layernorm(x, gamma, beta):
    M, H = x.shape
    return pl.pallas_call(
        _layernorm_kernel,
        out_shape=jax.ShapeDtypeStruct((M, H), jnp.float32),
        compiler_params=pltpu.CompilerParams(vmem_limit_bytes=VMEM_LIMIT),
    )(x, gamma.reshape(1, H), beta.reshape(1, H))


# ----------------------------------------------------------------------------
# Kernel 5: fused classifier head
#   relu(h @ W1 + b1) [dropout=identity] -> mean over seq -> @ W2pad + b2pad
#   -> masked softmax over real classes   (pool-before-w2: mean commutes with Linear)
# ----------------------------------------------------------------------------
def _classifier_kernel(h_ref, w1_ref, b1_ref, w2_ref, b2_ref, pool_ref, o_ref,
                       *, num_classes):
    h = h_ref[...].astype(jnp.bfloat16)
    z = jnp.dot(h, w1_ref[...], preferred_element_type=jnp.float32) + b1_ref[...]
    z = jnp.maximum(z, 0.0)
    # TODO(synk): nn.Dropout is identity at inference; training-mode random dropout not implemented.
    pooled = jnp.dot(pool_ref[...], z, preferred_element_type=jnp.float32)          # [B, H]
    logits = jnp.dot(pooled.astype(jnp.bfloat16), w2_ref[...],
                     preferred_element_type=jnp.float32) + b2_ref[...]              # [B, Cpad]
    col = jax.lax.broadcasted_iota(jnp.int32, logits.shape, 1)
    logits = jnp.where(col < num_classes, logits, -1e30)
    m = logits - jnp.max(logits, axis=-1, keepdims=True)
    e = jnp.exp(m)
    o_ref[...] = (e / jnp.sum(e, axis=-1, keepdims=True)).astype(o_ref.dtype)


def classifier_head(hidden, w1, b1, w2, b2, batch, seq):
    M, H = hidden.shape
    C = w2.shape[1]
    Cp = 128                                                    # lane-dense class dim
    w2p = jnp.zeros((H, Cp), w2.dtype).at[:, :C].set(w2)
    b2p = jnp.zeros((1, Cp), jnp.float32).at[0, :C].set(b2)
    # mean over all S positions (matches reference: output.mean(dim=1) incl. padded tokens)
    pool = jnp.repeat(jnp.eye(batch, dtype=jnp.float32), seq, axis=1) / seq         # [B, B*S]
    kern = functools.partial(_classifier_kernel, num_classes=C)
    probs = pl.pallas_call(
        kern,
        out_shape=jax.ShapeDtypeStruct((batch, Cp), jnp.float32),
        compiler_params=pltpu.CompilerParams(vmem_limit_bytes=VMEM_LIMIT),
    )(hidden, w1, b1.reshape(1, H), w2p, b2p, pool)
    return probs[:, :C]


# ----------------------------------------------------------------------------
# Mini-DistilBERT forward (thin glue around the kernels above)
# ----------------------------------------------------------------------------
def transformer_layer(p, x, mask_add, B, S):
    H = x.shape[1]
    qkv = qkv_proj(x, p["wqkv"], p["bqkv"])                      # [B*S, 3H]  (1 call)
    ctx = attention(qkv.reshape(B, S, 3 * H), mask_add, p["n_heads"])  # [B, S, H]
    x = layer_tail(ctx.reshape(B * S, H), x, p)                  # out-proj+LN+FFN+LN (1 call)
    return x


def distilbert_forward(params, input_ids, attention_mask):
    B, S = input_ids.shape
    H = params["word_emb"].shape[1]
    x = params["word_emb"][input_ids] + params["pos_emb"][jnp.arange(S)][None]
    x = x.reshape(B * S, H).astype(jnp.float32)
    x = layernorm(x, params["emb_ln_g"], params["emb_ln_b"])
    mask_add = ((1.0 - attention_mask.astype(jnp.float32)) * -1e9).reshape(B, 1, S)
    for layer in params["layers"]:
        x = transformer_layer(layer, x, mask_add, B, S)
    return x                                                     # [B*S, H]


def stance_detect_forward(params, input_ids, attention_mask):
    B, S = input_ids.shape
    hidden = distilbert_forward(params, input_ids, attention_mask)
    return classifier_head(hidden, params["cls_w1"], params["cls_b1"],
                           params["cls_w2"], params["cls_b2"], B, S)   # [B, num_pos]


# ----------------------------------------------------------------------------
# Deterministic parameter construction (weights stored bf16, norms/biases f32)
# ----------------------------------------------------------------------------
def init_params(key, vocab=100, max_pos=64, H=768, n_layers=2, n_heads=12,
                ffn=1536, num_pos=3):
    keys = iter(jax.random.split(key, 64))

    def dense(k, fan_in, fan_out):
        return (0.02 * jax.random.normal(k, (fan_in, fan_out), jnp.float32)
                ).astype(jnp.bfloat16)

    params = {
        "word_emb": 0.02 * jax.random.normal(next(keys), (vocab, H), jnp.float32),
        "pos_emb": 0.02 * jax.random.normal(next(keys), (max_pos, H), jnp.float32),
        "emb_ln_g": jnp.ones((H,), jnp.float32),
        "emb_ln_b": jnp.zeros((H,), jnp.float32),
        "layers": [],
        "cls_w1": dense(next(keys), H, H),
        "cls_b1": jnp.zeros((H,), jnp.float32),
        "cls_w2": dense(next(keys), H, num_pos),
        "cls_b2": jnp.zeros((num_pos,), jnp.float32),
    }
    for _ in range(n_layers):
        wq = dense(next(keys), H, H)
        wk = dense(next(keys), H, H)
        wv = dense(next(keys), H, H)
        params["layers"].append({
            "n_heads": n_heads,
            "wqkv": jnp.concatenate([wq, wk, wv], axis=1),        # fused [H, 3H]
            "bqkv": jnp.zeros((3 * H,), jnp.float32),
            "wo": dense(next(keys), H, H), "bo": jnp.zeros((H,), jnp.float32),
            "ln1_g": jnp.ones((H,), jnp.float32), "ln1_b": jnp.zeros((H,), jnp.float32),
            "w1": dense(next(keys), H, ffn), "b1": jnp.zeros((ffn,), jnp.float32),
            "w2": dense(next(keys), ffn, H), "b2": jnp.zeros((H,), jnp.float32),
            "ln2_g": jnp.ones((H,), jnp.float32), "ln2_b": jnp.zeros((H,), jnp.float32),
        })
    return params


# ----------------------------------------------------------------------------
if __name__ == "__main__":
    key = jax.random.PRNGKey(0)
    k_params, k_ids = jax.random.split(key)

    B, S, num_pos, vocab = 2, 8, 3, 100
    params = init_params(k_params, vocab=vocab, num_pos=num_pos)

    input_ids = jax.random.randint(k_ids, (B, S), 0, vocab, dtype=jnp.int32)
    attention_mask = jnp.array([[1, 1, 1, 1, 1, 1, 1, 1],
                                [1, 1, 1, 1, 1, 0, 0, 0]], dtype=jnp.int32)

    probs = stance_detect_forward(params, input_ids, attention_mask)
    probs = jax.block_until_ready(probs)

    assert probs.shape == (B, num_pos)
    assert bool(jnp.all(jnp.isfinite(probs)))
    assert bool(jnp.allclose(jnp.sum(probs, axis=1), 1.0, atol=1e-5))
    print("KERNEL_OK")
</pallas_src>

<mosaic_0001>
module attributes {stable_mosaic.version = 11 : i64} {
  func.func @_layernorm_kernel(%arg0: memref<16x768xf32, #tpu.memory_space<vmem>>, %arg1: memref<1x768xf32, #tpu.memory_space<vmem>>, %arg2: memref<1x768xf32, #tpu.memory_space<vmem>>, %arg3: memref<16x768xf32, #tpu.memory_space<vmem>>) attributes {dimension_semantics = [], scalar_prefetch = 0 : i64, scratch_operands = 0 : i64, tpu.core_type = #tpu.core_type<tc>} {
    %c0 = arith.constant 0 : index
    %c0_0 = arith.constant 0 : index
    %0 = vector.load %arg0[%c0, %c0_0] : memref<16x768xf32, #tpu.memory_space<vmem>>, vector<16x768xf32>
    %c0_1 = arith.constant 0 : index
    %c0_2 = arith.constant 0 : index
    %1 = vector.load %arg1[%c0_1, %c0_2] : memref<1x768xf32, #tpu.memory_space<vmem>>, vector<1x768xf32>
    %c0_3 = arith.constant 0 : index
    %c0_4 = arith.constant 0 : index
    %2 = vector.load %arg2[%c0_3, %c0_4] : memref<1x768xf32, #tpu.memory_space<vmem>>, vector<1x768xf32>
    %cst = arith.constant dense<0.000000e+00> : vector<16xf32>
    %3 = vector.multi_reduction <add>, %0, %cst [1] : vector<16x768xf32> to vector<16xf32>
    %4 = vector.shape_cast %3 : vector<16xf32> to vector<16x1xf32>
    %cst_5 = arith.constant 7.680000e+02 : f32
    %5 = vector.broadcast %cst_5 : f32 to vector<16x1xf32>
    %6 = arith.divf %4, %5 : vector<16x1xf32>
    %7 = vector.broadcast %6 : vector<16x1xf32> to vector<16x768xf32>
    %8 = arith.subf %0, %7 : vector<16x768xf32>
    %9 = arith.mulf %8, %8 : vector<16x768xf32>
    %cst_6 = arith.constant dense<0.000000e+00> : vector<16xf32>
    %10 = vector.multi_reduction <add>, %9, %cst_6 [1] : vector<16x768xf32> to vector<16xf32>
    %11 = vector.shape_cast %10 : vector<16xf32> to vector<16x1xf32>
    %cst_7 = arith.constant 7.680000e+02 : f32
    %12 = vector.broadcast %cst_7 : f32 to vector<16x1xf32>
    %13 = arith.divf %11, %12 : vector<16x1xf32>
    %14 = vector.broadcast %6 : vector<16x1xf32> to vector<16x768xf32>
    %15 = arith.subf %0, %14 : vector<16x768xf32>
    %cst_8 = arith.constant 9.99999996E-13 : f32
    %16 = vector.broadcast %cst_8 : f32 to vector<16x1xf32>
    %17 = arith.addf %13, %16 : vector<16x1xf32>
    %18 = math.rsqrt %17 : vector<16x1xf32>
    %19 = vector.broadcast %18 : vector<16x1xf32> to vector<16x768xf32>
    %20 = arith.mulf %15, %19 : vector<16x768xf32>
    %21 = vector.broadcast %1 : vector<1x768xf32> to vector<16x768xf32>
    %22 = arith.mulf %20, %21 : vector<16x768xf32>
    %23 = vector.broadcast %2 : vector<1x768xf32> to vector<16x768xf32>
    %24 = arith.addf %22, %23 : vector<16x768xf32>
    %c0_9 = arith.constant 0 : index
    %c0_10 = arith.constant 0 : index
    %25 = vector.load %arg3[%c0_9, %c0_10] : memref<16x768xf32, #tpu.memory_space<vmem>>, vector<16x768xf32>
    tpu.vector_store %arg3[%c0_9, %c0_10], %24 {strides = array<i32>} : memref<16x768xf32, #tpu.memory_space<vmem>>, vector<16x768xf32>,
    return
  }
}

</mosaic_0001>

<llo_original>
// kernel: tpu_custom_call.1
$region0: #{tpu_custom_call.1}
  #allocation0 [shape = 'u32[]', space=smem, size = 0x4, offset = 0x4, fixed_abs, tag = 'smem constant byte address 0x4 - core index']
  #allocation1 [shape = 'u32[144,128]{1,0:T(1,128)}', space=vmem, size = 0x12000, scoped, tag = 'internal scratch']
  %s0 = inlined_call_operand.hbm [shape: f32[16,768], index: 0, kind: input, shape index: {}]
  %s1 = inlined_call_operand.hbm [shape: f32[1,768], index: 1, kind: input, shape index: {}]
  %s2 = inlined_call_operand.hbm [shape: f32[1,768], index: 2, kind: input, shape index: {}]
  %s3 = inlined_call_operand.hbm [shape: f32[16,768], index: 3, kind: output, shape index: {}]
  %s4 = sld [smem:[#allocation0]]
  $region34: #{tpu_custom_call.1} parent=0
    _
  %s6 = ssub.s32 1, %s4
  %s7 = scalar_select 0, %s6, %s4
  $region1: #{tpu_custom_call.1} parent=0
    #allocation2 [shape = 'u8[49152]{0}', space=vmem, size = 0xc000, scoped, tag = 'input window, operand 0, single buffered']
    #allocation3 [shape = 's32[1]{0}', space=sflag, size = 0x4, scoped, tag = 'scoped memory for tpu_custom_call.1']
    #allocation4 [shape = 's32[1]{0}', space=sflag, size = 0x4, scoped, tag = 'scoped memory for tpu_custom_call.1']
    #allocation5 [shape = 'u8[3072]{0}', space=vmem, size = 0xc00, scoped, tag = 'input window, operand 1, single buffered']
    #allocation6 [shape = 's32[1]{0}', space=sflag, size = 0x4, scoped, tag = 'scoped memory for tpu_custom_call.1']
    #allocation7 [shape = 'u8[3072]{0}', space=vmem, size = 0xc00, scoped, tag = 'input window, operand 2, single buffered']
    #allocation8 [shape = 'u8[49152]{0}', space=vmem, size = 0xc000, scoped, tag = 'output window, operand 0, single buffered']
    %8 = vsyncpa [#allocation3], 0
    %9 = vsyncpa [#allocation6], 0
    %10 = vsyncpa [#allocation4], 0
    // Predicated region
    $region2: #{tpu_custom_call.1} parent=1 // pred_check
      _
    $region3: #{tpu_custom_call.1} parent=1 // pred_check_branch
      %12 = sbr.rel (0) target = $region5
    $region4: #{tpu_custom_call.1} parent=1 // pred_region
      %s14 = ssub.s32 1536, 1536
      %15 = vsyncadd [#allocation3], %s14
      %s16 = sshll.u32 [#allocation2], 4
      %s17 = int_to_ptr.vmem [resolvable:$true] %s16
      %22 = dma.hbm_to_vmem [thread:$0]  %s0, 1536, %s17, [#allocation3], 768, 768, 48
    $region5: #{tpu_custom_call.1} parent=1 // pred_fallthru
      _
    // Predicated region
    $region6: #{tpu_custom_call.1} parent=1 // pred_check
      _
    $region7: #{tpu_custom_call.1} parent=1 // pred_check_branch
      %24 = sbr.rel (0) target = $region9
    $region8: #{tpu_custom_call.1} parent=1 // pred_region
      %s26 = ssub.s32 96, 96
      %27 = vsyncadd [#allocation6], %s26
      %s29 = sshll.u32 [#allocation5], 4
      %s30 = int_to_ptr.vmem [resolvable:$true] %s29
      %32 = dma.hbm_to_vmem [thread:$0]  %s1, 96, %s30, [#allocation6]
    $region9: #{tpu_custom_call.1} parent=1 // pred_fallthru
      _
    // Predicated region
    $region10: #{tpu_custom_call.1} parent=1 // pred_check
      _
    $region11: #{tpu_custom_call.1} parent=1 // pred_check_branch
      %34 = sbr.rel (0) target = $region13
    $region12: #{tpu_custom_call.1} parent=1 // pred_region
      %s36 = ssub.s32 96, 96
      %37 = vsyncadd [#allocation6], %s36
      %s39 = sshll.u32 [#allocation7], 4
      %s40 = int_to_ptr.vmem [resolvable:$true] %s39
      %42 = dma.hbm_to_vmem [thread:$0]  %s2, 96, %s40, [#allocation6]
    $region13: #{tpu_custom_call.1} parent=1 // pred_fallthru
      _
    // Predicated region
    $region14: #{tpu_custom_call.1} parent=1 // pred_check
      _
    $region15: #{tpu_custom_call.1} parent=1 // pred_check_branch
      %44 = sbr.rel (0) target = $region17
    $region16: #{tpu_custom_call.1} parent=1 // pred_region
      %45 = dma.done [#allocation3], 1536
    $region17: #{tpu_custom_call.1} parent=1 // pred_fallthru
      _
    // Predicated region
    $region18: #{tpu_custom_call.1} parent=1 // pred_check
      _
    $region19: #{tpu_custom_call.1} parent=1 // pred_check_branch
      %47 = sbr.rel (0) target = $region21
    $region20: #{tpu_custom_call.1} parent=1 // pred_region
      %48 = dma.done [#allocation6], 96
    $region21: #{tpu_custom_call.1} parent=1 // pred_fallthru
      _
    // Predicated region
    $region22: #{tpu_custom_call.1} parent=1 // pred_check
      _
    $region23: #{tpu_custom_call.1} parent=1 // pred_check_branch
      %50 = sbr.rel (0) target = $region25
    $region24: #{tpu_custom_call.1} parent=1 // pred_region
      %51 = dma.done [#allocation6], 96
    $region25: #{tpu_custom_call.1} parent=1 // pred_fallthru
      _
    %v52 = vld [vmem:[#allocation2] sm:$0xff]
    %v53 = vld [vmem:[#allocation2 + $0x8] sm:$0xff]
    %v54 = vld [vmem:[#allocation2 + $0x10] sm:$0xff]
    %v55 = vld [vmem:[#allocation2 + $0x18] sm:$0xff]
    %v56 = vld [vmem:[#allocation2 + $0x20] sm:$0xff]
    %v57 = vld [vmem:[#allocation2 + $0x28] sm:$0xff]
    %v58 = vld [vmem:[#allocation2 + $0x30] sm:$0xff]
    %v59 = vld [vmem:[#allocation2 + $0x38] sm:$0xff]
    %v60 = vld [vmem:[#allocation2 + $0x40] sm:$0xff]
    %v61 = vld [vmem:[#allocation2 + $0x48] sm:$0xff]
    %v62 = vld [vmem:[#allocation2 + $0x50] sm:$0xff]
    %v63 = vld [vmem:[#allocation2 + $0x58] sm:$0xff]
    %v64 = vld [vmem:[#allocation5] sm:$0x3f]
    %v65 = vld [vmem:[#allocation7] sm:$0x3f]
    %v66 = vadd.f32 %v52, %v53
    %v67 = vadd.f32 %v66, %v54
    %v68 = vadd.f32 %v67, %v55
    %v69 = vadd.f32 %v68, %v56
    %v70 = vadd.f32 %v69, %v57
    %71 = vadd.xlane.f32.xlu0 %v70
    %v72 = vpop.xlane.xlu0 %71
    %v73 = vadd.f32 %v58, %v59
    %v74 = vadd.f32 %v73, %v60
    %v75 = vadd.f32 %v74, %v61
    %v76 = vadd.f32 %v75, %v62
    %v77 = vadd.f32 %v76, %v63
    %78 = vadd.xlane.f32.xlu0 %v77
    %v79 = vpop.xlane.xlu0 %78
    %v80 = vrcp.pop 768.0
    %v81 = vmul.f32 %v72, %v80
    %v82 = vmul.f32 %v79, %v80
    %v83 = vsub.f32 %v52, %v81
    %v84 = vsub.f32 %v53, %v81
    %v85 = vsub.f32 %v54, %v81
    %v86 = vsub.f32 %v55, %v81
    %v87 = vsub.f32 %v56, %v81
    %v88 = vsub.f32 %v57, %v81
    %v89 = vsub.f32 %v58, %v82
    %v90 = vsub.f32 %v59, %v82
    %v91 = vsub.f32 %v60, %v82
    %v92 = vsub.f32 %v61, %v82
    %v93 = vsub.f32 %v62, %v82
    %v94 = vsub.f32 %v63, %v82
    %v95 = vmul.f32 %v83, %v83
    %v96 = vmul.f32 %v84, %v84
    %v97 = vmul.f32 %v85, %v85
    %v98 = vmul.f32 %v86, %v86
    %v99 = vmul.f32 %v87, %v87
    %v100 = vmul.f32 %v88, %v88
    %v101 = vmul.f32 %v89, %v89
    %v102 = vmul.f32 %v90, %v90
    %v103 = vmul.f32 %v91, %v91
    %v104 = vmul.f32 %v92, %v92
    %v105 = vmul.f32 %v93, %v93
    %v106 = vmul.f32 %v94, %v94
    %v107 = vadd.f32 %v95, %v96
    %v108 = vadd.f32 %v107, %v97
    %v109 = vadd.f32 %v108, %v98
    %v110 = vadd.f32 %v109, %v99
    %v111 = vadd.f32 %v110, %v100
    %112 = vadd.xlane.f32.xlu0 %v111
    %v113 = vpop.xlane.xlu0 %112
    %v114 = vadd.f32 %v101, %v102
    %v115 = vadd.f32 %v114, %v103
    %v116 = vadd.f32 %v115, %v104
    %v117 = vadd.f32 %v116, %v105
    %v118 = vadd.f32 %v117, %v106
    %119 = vadd.xlane.f32.xlu0 %v118
    %v120 = vpop.xlane.xlu0 %119
    %v121 = vmul.f32 %v113, %v80
    %v122 = vmul.f32 %v120, %v80
    %v123 = vadd.f32 %v121, 1e-12
    %v124 = vadd.f32 %v122, 1e-12
    %v125 = vrsqrt.pop %v123
    %v126 = vrsqrt.pop %v124
    %v127 = vmul.f32 %v83, %v125
    %v128 = vmul.f32 %v84, %v125
    %v129 = vmul.f32 %v85, %v125
    %v130 = vmul.f32 %v86, %v125
    %v131 = vmul.f32 %v87, %v125
    %v132 = vmul.f32 %v88, %v125
    %v133 = vmul.f32 %v89, %v126
    %v134 = vmul.f32 %v90, %v126
    %v135 = vmul.f32 %v91, %v126
    %v136 = vmul.f32 %v92, %v126
    %v137 = vmul.f32 %v93, %v126
    %v138 = vmul.f32 %v94, %v126
    %v140 = vlaneseq
    %v141 = vshrl.u32 %v140, 7
    %v142 = vsub.s32 0, %v141
    %v143 = vrot.slane %v64, %v142
    %v144 = vlaneseq
    %v145 = vshrl.u32 %v144, 7
    %v146 = vsub.s32 1, %v145
    %v147 = vrot.slane %v64, %v146
    %v148 = vlaneseq
    %v149 = vshrl.u32 %v148, 7
    %v150 = vsub.s32 2, %v149
    %v151 = vrot.slane %v64, %v150
    %v152 = vlaneseq
    %v153 = vshrl.u32 %v152, 7
    %v154 = vsub.s32 3, %v153
    %v155 = vrot.slane %v64, %v154
    %v156 = vlaneseq
    %v157 = vshrl.u32 %v156, 7
    %v158 = vsub.s32 4, %v157
    %v159 = vrot.slane %v64, %v158
    %v160 = vlaneseq
    %v161 = vshrl.u32 %v160, 7
    %v162 = vsub.s32 5, %v161
    %v163 = vrot.slane %v64, %v162
    %v170 = vmul.f32 %v127, %v143
    %v171 = vmul.f32 %v128, %v147
    %v172 = vmul.f32 %v129, %v151
    %v173 = vmul.f32 %v130, %v155
    %v174 = vmul.f32 %v131, %v159
    %v175 = vmul.f32 %v132, %v163
    %v176 = vmul.f32 %v133, %v143
    %v177 = vmul.f32 %v134, %v147
    %v178 = vmul.f32 %v135, %v151
    %v179 = vmul.f32 %v136, %v155
    %v180 = vmul.f32 %v137, %v159
    %v181 = vmul.f32 %v138, %v163
    %v183 = vlaneseq
    %v184 = vshrl.u32 %v183, 7
    %v185 = vsub.s32 0, %v184
    %v186 = vrot.slane %v65, %v185
    %v187 = vlaneseq
    %v188 = vshrl.u32 %v187, 7
    %v189 = vsub.s32 1, %v188
    %v190 = vrot.slane %v65, %v189
    %v191 = vlaneseq
    %v192 = vshrl.u32 %v191, 7
    %v193 = vsub.s32 2, %v192
    %v194 = vrot.slane %v65, %v193
    %v195 = vlaneseq
    %v196 = vshrl.u32 %v195, 7
    %v197 = vsub.s32 3, %v196
    %v198 = vrot.slane %v65, %v197
    %v199 = vlaneseq
    %v200 = vshrl.u32 %v199, 7
    %v201 = vsub.s32 4, %v200
    %v202 = vrot.slane %v65, %v201
    %v203 = vlaneseq
    %v204 = vshrl.u32 %v203, 7
    %v205 = vsub.s32 5, %v204
    %v206 = vrot.slane %v65, %v205
    %v213 = vadd.f32 %v170, %v186
    %v214 = vadd.f32 %v171, %v190
    %v215 = vadd.f32 %v172, %v194
    %v216 = vadd.f32 %v173, %v198
    %v217 = vadd.f32 %v174, %v202
    %v218 = vadd.f32 %v175, %v206
    %v219 = vadd.f32 %v176, %v186
    %v220 = vadd.f32 %v177, %v190
    %v221 = vadd.f32 %v178, %v194
    %v222 = vadd.f32 %v179, %v198
    %v223 = vadd.f32 %v180, %v202
    %v224 = vadd.f32 %v181, %v206
    %225 = vst [vmem:[#allocation8] sm:$0xff] %v213
    %226 = vst [vmem:[#allocation8 + $0x8] sm:$0xff] %v214
    %227 = vst [vmem:[#allocation8 + $0x10] sm:$0xff] %v215
    %228 = vst [vmem:[#allocation8 + $0x18] sm:$0xff] %v216
    %229 = vst [vmem:[#allocation8 + $0x20] sm:$0xff] %v217
    %230 = vst [vmem:[#allocation8 + $0x28] sm:$0xff] %v218
    %231 = vst [vmem:[#allocation8 + $0x30] sm:$0xff] %v219
    %232 = vst [vmem:[#allocation8 + $0x38] sm:$0xff] %v220
    %233 = vst [vmem:[#allocation8 + $0x40] sm:$0xff] %v221
    %234 = vst [vmem:[#allocation8 + $0x48] sm:$0xff] %v222
    %235 = vst [vmem:[#allocation8 + $0x50] sm:$0xff] %v223
    %236 = vst [vmem:[#allocation8 + $0x58] sm:$0xff] %v224
    // Predicated region
    $region26: #{tpu_custom_call.1} parent=1 // pred_check
      _
    $region27: #{tpu_custom_call.1} parent=1 // pred_check_branch
      %238 = sbr.rel (0) target = $region29
    $region28: #{tpu_custom_call.1} parent=1 // pred_region
      %s240 = ssub.s32 1536, 1536
      %241 = vsyncadd [#allocation4], %s240
      %s242 = sshll.u32 [#allocation8], 4
      %s243 = int_to_ptr.vmem [resolvable:$true] %s242
      %248 = dma.vmem_to_hbm [thread:$0]  %s243, 1536, %s3, [#allocation4], 768, 768, 48
    $region29: #{tpu_custom_call.1} parent=1 // pred_fallthru
      _
    // Predicated region
    $region30: #{tpu_custom_call.1} parent=1 // pred_check
      _
    $region31: #{tpu_custom_call.1} parent=1 // pred_check_branch
      %250 = sbr.rel (0) target = $region33
    $region32: #{tpu_custom_call.1} parent=1 // pred_region
      %251 = dma.done [#allocation4], 1536
    $region33: #{tpu_custom_call.1} parent=1 // pred_fallthru
      _
    %252 = vsyncpa [#allocation3], 1
    %253 = vsyncpa [#allocation6], 1
    %254 = vsyncpa [#allocation4], 1

</llo_original>
